<compile_context>
chip_gen: v6e
topology: v6e:2x2x1
jax: 0.10.0
libtpu: 0.0.40
codegen_flags: <defaults>
</compile_context>

<pallas_src>
import jax
import jax.numpy as jnp
from jax.experimental import pallas as pl
from jax.experimental.pallas import tpu as pltpu


# Below this size the fixed pallas_call dispatch + pipeline prologue dominate,
# and the custom-call boundary blocks XLA from fusing the multiply -> plain JAX.
_SMALL_INPUT_BYTES = 1 << 20  # 1 MiB

# Per-tile byte budget and the scoped-VMEM limit we request to hold the
# double-buffered tiles (4 x 6 MiB = 24 MiB) with headroom on every generation.
_MAX_TILE_BYTES = 6 * 1024 * 1024
_VMEM_LIMIT_BYTES = 40 * 1024 * 1024


def _drop_path_kernel(x_ref, s_ref, o_ref):
    # x_ref / o_ref: (TB, TC) tile of the flattened input/output.
    # s_ref:         (TB, 1) float32 per-sample scale (mask / keep_prob).
    # Multiply in f32 (free under the HBM DMA) and cast only the result so a
    # low-precision input dtype never rounds the 1/keep_prob scale.
    x = x_ref[...].astype(jnp.float32)
    o_ref[...] = (x * s_ref[...]).astype(o_ref.dtype)


def _sublane_multiple(itemsize):
    # Sub-32-bit dtypes pack along sublanes: f32 vreg = 8x128, bf16/f16 =
    # 16x128, int8/fp8 = 32x128.  Round the batch tile to the packed height.
    return max(8, 32 // max(1, int(itemsize)))


def _pick_block(B, C, itemsize):
    """Choose a lane-dense (TB, TC) block within the per-tile byte budget."""
    sub = _sublane_multiple(itemsize)
    max_elems = max(1, _MAX_TILE_BYTES // itemsize)

    # Lane (last) dim: prefer the full feature width; otherwise a large
    # multiple of 128 that (when possible) divides C so the last column block
    # stays full and every output store is an unmasked, lane-dense vst.
    if C <= 128 or C * sub <= max_elems:
        tc = C
    else:
        max_tc = max(128, ((max_elems // sub) // 128) * 128)
        max_tc = min(max_tc, max(128, (C // 128) * 128))
        tc = max_tc
        if C % 128 == 0:
            t = max_tc
            while t >= 128 and C % t != 0:
                t -= 128
            if t >= 128:
                tc = t

    # Sublane dim: pack as many samples as fit; multiple of the packed vreg
    # height (or the full batch).
    rows = max(1, max_elems // tc)
    if rows >= B or B <= sub:
        tb = B
    else:
        tb = max(sub, (rows // sub) * sub)
    return tb, tc


def _ensure_multiblock(B, C, tb, tc, sub):
    """Keep >=2 blocks on the 'parallel' grid so v7x's 2 TensorCores share it."""
    if pl.cdiv(B, tb) * pl.cdiv(C, tc) >= 2:
        return tb, tc
    # Single-block grid implies tb == B and tc == C.  Prefer splitting the
    # batch (sublane) axis; otherwise split the lane axis at 128 granularity.
    if B >= 2 * sub:
        half = -(-(B // 2) // sub) * sub          # ceil(B/2) rounded up to sub
        return min(half, B), tc
    if C >= 256 and C % 256 == 0:
        return tb, C // 2                         # still a full 128-multiple
    return tb, tc


def drop_path(x, key, drop_prob: float = 0.0, training: bool = False,
              donate_x: bool = False):
    """Functional equivalent of timm's drop_path; hot path in Pallas.

    Intended for floating-point activations (the PyTorch reference errors on
    integer inputs since torch.rand has no integer dtype).
    """
    if drop_prob == 0.0 or not training:
        return x
    keep_prob = 1.0 - float(drop_prob)
    if keep_prob <= 0.0:
        # Guard: the raw formula yields inf * 0 = NaN; every sample is dropped.
        return jnp.zeros_like(x)

    B = x.shape[0]
    # Per-sample Bernoulli(keep_prob) mask, same construction as PyTorch:
    # floor(keep_prob + uniform[0,1)).
    u = jax.random.uniform(key, (B,), dtype=jnp.float32)
    mask = jnp.floor(keep_prob + u)                        # (B,) of {0.0, 1.0}
    scale = mask * jnp.float32(1.0 / keep_prob)            # (B,) f32 scale

    itemsize = x.dtype.itemsize
    # Tiny-input fallback: let XLA fuse the multiply into neighbouring ops.
    if x.size * itemsize < _SMALL_INPUT_BYTES:
        bshape = (B,) + (1,) * (x.ndim - 1)
        out = x.astype(jnp.float32) * scale.reshape(bshape)
        return out.astype(x.dtype)

    # Lane-dense 2D view: (B, N*D*...).
    C = x.size // B
    x2 = x.reshape(B, C)
    s2 = scale.reshape(B, 1)
    sub = _sublane_multiple(itemsize)
    tb, tc = _pick_block(B, C, itemsize)
    tb, tc = _ensure_multiblock(B, C, tb, tc, sub)
    grid = (pl.cdiv(B, tb), pl.cdiv(C, tc))

    out2 = pl.pallas_call(
        _drop_path_kernel,
        out_shape=jax.ShapeDtypeStruct((B, C), x.dtype),
        grid=grid,
        in_specs=[
            pl.BlockSpec((tb, tc), lambda i, j: (i, j)),   # x tile
            pl.BlockSpec((tb, 1), lambda i, j: (i, 0)),    # per-sample scale
        ],
        out_specs=pl.BlockSpec((tb, tc), lambda i, j: (i, j)),
        compiler_params=pltpu.CompilerParams(
            dimension_semantics=("parallel", "parallel"),
            vmem_limit_bytes=_VMEM_LIMIT_BYTES),
        cost_estimate=pl.CostEstimate(
            flops=B * C,
            transcendentals=0,
            bytes_accessed=2 * B * C * itemsize + 4 * B),
        input_output_aliases=({0: 0} if donate_x else {}),
    )(x2, s2)
    return out2.reshape(x.shape)


class DropPath:
    """Stateless module mirroring the PyTorch DropPath (no parameters)."""

    def __init__(self, drop_prob=None):
        self.drop_prob = 0.0 if drop_prob is None else float(drop_prob)
        self.training = True

    def __call__(self, x, key):
        return drop_path(x, key, self.drop_prob, self.training)


if __name__ == "__main__":
    root = jax.random.PRNGKey(0)
    k_mask, k_big, k_bf16, k_small = jax.random.split(root, 4)

    drop_prob = 0.25
    keep_prob = 1.0 - drop_prob
    mod = DropPath(drop_prob)
    mod.training = True

    # --- 1) Pallas kernel path, f32: B=16, N=128, D=256 (2 MiB, lane-dense) ---
    x_big = jax.random.normal(k_big, (16, 128, 256), dtype=jnp.float32)
    y_big = jax.block_until_ready(mod(x_big, k_mask))
    u = jax.random.uniform(k_mask, (x_big.shape[0],), dtype=jnp.float32)
    scale_ref = jnp.floor(keep_prob + u) * jnp.float32(1.0 / keep_prob)
    y_big_ref = x_big * scale_ref[:, None, None]
    assert y_big.dtype == x_big.dtype
    assert jnp.allclose(y_big, y_big_ref, atol=1e-5, rtol=1e-5), \
        "f32 kernel-path mismatch"

    # --- 2) Pallas kernel path, bf16 (dtype-aware sublane tiling + f32 math) ---
    x_bf = jax.random.normal(k_bf16, (32, 128, 384),
                             dtype=jnp.float32).astype(jnp.bfloat16)
    y_bf = jax.block_until_ready(mod(x_bf, k_mask))
    u_bf = jax.random.uniform(k_mask, (x_bf.shape[0],), dtype=jnp.float32)
    scale_bf = jnp.floor(keep_prob + u_bf) * jnp.float32(1.0 / keep_prob)
    y_bf_ref = (x_bf.astype(jnp.float32) * scale_bf[:, None, None]).astype(
        jnp.bfloat16)
    assert y_bf.dtype == jnp.bfloat16
    assert jnp.allclose(y_bf.astype(jnp.float32), y_bf_ref.astype(jnp.float32),
                        atol=1e-2, rtol=1e-2), "bf16 kernel-path mismatch"

    # --- 3) tiny input -> fused plain-JAX fallback ---
    x_small = jax.random.normal(k_small, (2, 8, 32), dtype=jnp.float32)
    y_small = jax.block_until_ready(mod(x_small, k_mask))
    u_s = jax.random.uniform(k_mask, (x_small.shape[0],), dtype=jnp.float32)
    m_s = jnp.floor(keep_prob + u_s)
    y_small_ref = x_small / keep_prob * m_s[:, None, None]
    assert jnp.allclose(y_small, y_small_ref, atol=1e-6, rtol=1e-6), \
        "fallback-path mismatch"

    # --- 4) eval path / drop_prob=0 -> identity ---
    mod_eval = DropPath(drop_prob)
    mod_eval.training = False
    y_eval = jax.block_until_ready(mod_eval(x_small, k_mask))
    assert jnp.array_equal(y_eval, x_small), "eval path should be identity"

    # --- 5) drop_prob=1.0 -> all samples dropped (guarded, no NaN) ---
    mod_all = DropPath(1.0)
    mod_all.training = True
    y_all = jax.block_until_ready(mod_all(x_small, k_mask))
    assert jnp.array_equal(y_all, jnp.zeros_like(x_small)), \
        "drop_prob=1.0 should give zeros"

    print("KERNEL_OK")
</pallas_src>

<mosaic_0001>
module attributes {stable_mosaic.version = 11 : i64} {
  func.func @_drop_path_kernel(%arg0: i32, %arg1: i32, %arg2: memref<8x32768xf32, #tpu.memory_space<vmem>>, %arg3: memref<8x1xf32, #tpu.memory_space<vmem>>, %arg4: memref<8x32768xf32, #tpu.memory_space<vmem>>) attributes {dimension_semantics = [#tpu.dimension_semantics<parallel>, #tpu.dimension_semantics<parallel>], iteration_bounds = array<i64: 2, 1>, scalar_prefetch = 0 : i64, scratch_operands = 0 : i64, tpu.core_type = #tpu.core_type<tc>, window_params = [{transform_indices = @transform_0, window_bounds = array<i64: 8, 32768>}, {transform_indices = @transform_1, window_bounds = array<i64: 8, 1>}, {transform_indices = @transform_2, window_bounds = array<i64: 8, 32768>}]} {
    %c0 = arith.constant 0 : index
    %c0_0 = arith.constant 0 : index
    %0 = vector.load %arg2[%c0, %c0_0] : memref<8x32768xf32, #tpu.memory_space<vmem>>, vector<8x32768xf32>
    %c0_1 = arith.constant 0 : index
    %c0_2 = arith.constant 0 : index
    %1 = vector.load %arg3[%c0_1, %c0_2] : memref<8x1xf32, #tpu.memory_space<vmem>>, vector<8x1xf32>
    %2 = vector.broadcast %1 : vector<8x1xf32> to vector<8x32768xf32>
    %3 = arith.mulf %0, %2 : vector<8x32768xf32>
    %c0_3 = arith.constant 0 : index
    %c0_4 = arith.constant 0 : index
    %4 = vector.load %arg4[%c0_3, %c0_4] : memref<8x32768xf32, #tpu.memory_space<vmem>>, vector<8x32768xf32>
    tpu.vector_store %arg4[%c0_3, %c0_4], %3 {strides = array<i32>} : memref<8x32768xf32, #tpu.memory_space<vmem>>, vector<8x32768xf32>,
    return
  }
  func.func @transform_0(%arg0: i32, %arg1: i32) -> (i32, i32) {
    %c0_i32 = arith.constant 0 : i32
    return %arg0, %arg1 : i32, i32
  }
  func.func @transform_1(%arg0: i32, %arg1: i32) -> (i32, i32) {
    %c0_i32 = arith.constant 0 : i32
    %c0_i32_0 = arith.constant 0 : i32
    return %arg0, %c0_i32 : i32, i32
  }
  func.func @transform_2(%arg0: i32, %arg1: i32) -> (i32, i32) {
    %c0_i32 = arith.constant 0 : i32
    return %arg0, %arg1 : i32, i32
  }
}

</mosaic_0001>

<llo_original>
// kernel: tpu_custom_call.1
$region0: #{tpu_custom_call.1}
  #allocation0 [shape = 'u32[]', space=smem, size = 0x4, offset = 0x4, fixed_abs, tag = 'smem constant byte address 0x4 - core index']
  #allocation1 [shape = 'u32[144,128]{1,0:T(1,128)}', space=vmem, size = 0x12000, scoped, tag = 'internal scratch']
  %s0 = inlined_call_operand.hbm [shape: f32[16,32768], index: 0, kind: input, shape index: {}]
  %s1 = inlined_call_operand.vmem [shape: f32[16,1], index: 1, kind: input, shape index: {}]
  %s2 = inlined_call_operand.hbm [shape: f32[16,32768], index: 2, kind: output, shape index: {}]
  %s3 = sld [smem:[#allocation0]]
  $region45: #{tpu_custom_call.1} parent=0
    _
  %s5 = ssub.s32 1, %s3
  %s6 = scalar_select 0, %s5, %s3
  $region1: #{tpu_custom_call.1} parent=0
    #allocation2 [shape = 'u8[2097152]{0}', space=vmem, size = 0x200000, scoped, tag = 'input window, operand 0']
    #allocation3 [shape = 's32[2]{0}', space=sflag, size = 0x8, scoped, tag = 'scoped memory for tpu_custom_call.1']
    #allocation4 [shape = 's32[2]{0}', space=sflag, size = 0x8, scoped, tag = 'scoped memory for tpu_custom_call.1']
    #allocation5 [shape = 'u8[2097152]{0}', space=vmem, size = 0x200000, scoped, tag = 'output window, operand 0']
    %7 = vsyncpa [#allocation3], 0
    %s8 = scalar_lea.sflag [#allocation3], 1
    %9 = vsyncpa %s8, 0
    %10 = vsyncpa [#allocation4], 0
    %s11 = scalar_lea.sflag [#allocation4], 1
    %12 = vsyncpa %s11, 0
    loop: start=0, step=1, limit=4
    $region2: #{tpu_custom_call.1} parent=1 // loop_pre_header
      _
    $region3: #{tpu_custom_call.1} parent=1 // loop_header
      %s14 = sphi 0, %s18
      %p15 = scmp.ge.s32.totalorder %s14, 4
      %s21 = sphi 0, %s33
      %s22 = sphi 0, %s29
      %s23 = sphi 0, %s21
      %s24 = sphi 0, %s22
      %s25 = sphi 0, %s23
      %s26 = sphi 0, %s24
      %s38 = sphi 0, %s40
      %s41 = sphi 0, %s38
      %s42 = sphi 0, %s41
      %s58 = sphi 0, %s42
      %s64 = sphi 0, %s66
      %s67 = sphi 0, %s64
      %s68 = sphi 0, %s67
      %s84 = sphi 0, %s68
      %s92 = sphi 0, %s94
      %s95 = sphi 0, %s92
      %s96 = sphi 0, %s95
      %s112 = sphi 0, %s96
    $region4: #{tpu_custom_call.1} parent=1 // loop_header_branch
      %17 = sbr.rel (%p15) target = $region8
    $region5: #{tpu_custom_call.1} parent=1 // loop_body
      %s19 = ssub.s32 %s14, 1
      %s20 = ssub.s32 %s14, 2
      %s27 = sadd.s32 1, %s22
      %p28 = scmp.ge.s32.totalorder %s27, 1
      %s29 = scalar_select %p28, 0, %s27
      %s30 = sadd.s32 1, %s21
      %s31 = scalar_select %p28, %s30, %s21
      %p32 = scmp.ge.s32.totalorder %s31, 2
      %s33 = scalar_select %p32, 0, %s31
      %s34 = ssub.s32 %s21, %s33
      %s35 = ssub.s32 %s22, %s29
      %s36 = sor.u32 %s34, %s35
      %p37 = scmp.eq.s32.totalorder %s36, 0
      %s39 = sadd.s32 %s38, 1
      %s40 = scalar_select %p37, %s38, %s39
      %p43 = pneg %p37
      %p44 = scmp.eq.s32.totalorder %s14, 1
      %p45 = por %p43, %p44
      %p46 = scmp.ne.s32.totalorder %s38, %s41
      %p47 = scmp.eq.s32.totalorder %s14, 0
      %p48 = por %p46, %p47
      %p49 = scmp.ne.s32.totalorder %s38, %s41
      %p50 = scmp.eq.s32.totalorder %s19, 1
      %p51 = por %p49, %p50
      %p52 = scmp.ne.s32.totalorder %s41, %s42
      %p53 = scmp.eq.s32.totalorder %s19, 0
      %p54 = por %p52, %p53
      %p55 = scmp.ne.s32.totalorder %s41, %s42
      %p56 = scmp.eq.s32.totalorder %s20, 1
      %p57 = por %p55, %p56
      %p59 = scmp.ne.s32.totalorder %s42, %s58
      %p60 = scmp.eq.s32.totalorder %s20, 0
      %p61 = por %p59, %p60
      %s62 = ssub.s32 %s21, %s33
      %p63 = scmp.eq.s32.totalorder %s62, 0
      %s65 = sadd.s32 %s64, 1
      %s66 = scalar_select %p63, %s64, %s65
      %p69 = pneg %p63
      %p70 = scmp.eq.s32.totalorder %s14, 1
      %p71 = por %p69, %p70
      %p72 = scmp.ne.s32.totalorder %s64, %s67
      %p73 = scmp.eq.s32.totalorder %s14, 0
      %p74 = por %p72, %p73
      %p75 = scmp.ne.s32.totalorder %s64, %s67
      %p76 = scmp.eq.s32.totalorder %s19, 1
      %p77 = por %p75, %p76
      %p78 = scmp.ne.s32.totalorder %s67, %s68
      %p79 = scmp.eq.s32.totalorder %s19, 0
      %p80 = por %p78, %p79
      %p81 = scmp.ne.s32.totalorder %s67, %s68
      %p82 = scmp.eq.s32.totalorder %s20, 1
      %p83 = por %p81, %p82
      %p85 = scmp.ne.s32.totalorder %s68, %s84
      %p86 = scmp.eq.s32.totalorder %s20, 0
      %p87 = por %p85, %p86
      %s88 = ssub.s32 %s21, %s33
      %s89 = ssub.s32 %s22, %s29
      %s90 = sor.u32 %s88, %s89
      %p91 = scmp.eq.s32.totalorder %s90, 0
      %s93 = sadd.s32 %s92, 1
      %s94 = scalar_select %p91, %s92, %s93
      %p97 = pneg %p91
      %p98 = scmp.eq.s32.totalorder %s14, 1
      %p99 = por %p97, %p98
      %p100 = scmp.ne.s32.totalorder %s92, %s95
      %p101 = scmp.eq.s32.totalorder %s14, 0
      %p102 = por %p100, %p101
      %p103 = scmp.ne.s32.totalorder %s92, %s95
      %p104 = scmp.eq.s32.totalorder %s19, 1
      %p105 = por %p103, %p104
      %p106 = scmp.ne.s32.totalorder %s95, %s96
      %p107 = scmp.eq.s32.totalorder %s19, 0
      %p108 = por %p106, %p107
      %p109 = scmp.ne.s32.totalorder %s95, %s96
      %p110 = scmp.eq.s32.totalorder %s20, 1
      %p111 = por %p109, %p110
      %p113 = scmp.ne.s32.totalorder %s96, %s112
      %p114 = scmp.eq.s32.totalorder %s20, 0
      %p115 = por %p113, %p114
      %p116 = scmp.le.s32.totalorder 1, %s14
      %p117 = scmp.lt.s32.totalorder %s14, 3
      %p118 = pnand %p116, %p117
      %p119 = pneg %p118
      // Predicated region
      $region9: #{tpu_custom_call.1} parent=5 // pred_check
        _
      $region10: #{tpu_custom_call.1} parent=5 // pred_check_branch
        %121 = sbr.rel (%p118) target = $region12
      $region11: #{tpu_custom_call.1} parent=5 // pred_region
        %s122 = ssub.s32 %s14, 1
      $region12: #{tpu_custom_call.1} parent=5 // pred_fallthru
        _
      %p123 = scmp.lt.s32.totalorder %s14, 2
      // Predicated region
      $region13: #{tpu_custom_call.1} parent=5 // pred_check
        %p124 = pneg %p123
      $region14: #{tpu_custom_call.1} parent=5 // pred_check_branch
        %126 = sbr.rel (%p124) target = $region16
      $region15: #{tpu_custom_call.1} parent=5 // pred_region
        // Predicated region
        $region17: #{tpu_custom_call.1} parent=15 // pred_check
          %p127 = pneg %p48
        $region18: #{tpu_custom_call.1} parent=15 // pred_check_branch
          %129 = sbr.rel (%p127) target = $region20
        $region19: #{tpu_custom_call.1} parent=15 // pred_region
          %s130 = sand.u32 %s38, 1
          %s131 = scalar_lea.sflag [#allocation3], %s130
          %s132 = sand.u32 %s38, 1
          %s133 = smul.addr %s132, 2048
          %s134 = scalar_lea.vmem [#allocation2], %s133
          %s135 = smul.u32 256, %s22
          %s137 = ssub.s32 32768, 32768
          %138 = vsyncadd %s131, %s137
          %s139 = smul.addr %s21, 256
          %s140 = sadd.s32 %s135, %s139
          %s141 = smul.addr %s140, 128
          %s142 = scalar_lea.hbm %s0, %s141
          %s144 = sshll.u32 %s134, 4
          %s145 = int_to_ptr.vmem [resolvable:$true] %s144
          %147 = dma.hbm_to_vmem [thread:$0]  %s142, 32768, %s145, %s131
        $region20: #{tpu_custom_call.1} parent=15 // pred_fallthru
          _
        // Predicated region
        $region21: #{tpu_custom_call.1} parent=15 // pred_check
          %p148 = pneg %p74
        $region22: #{tpu_custom_call.1} parent=15 // pred_check_branch
          %150 = sbr.rel (%p148) target = $region24
        $region23: #{tpu_custom_call.1} parent=15 // pred_region
          %p151 = scmp.lt.s32.totalorder %s21, 1
          %s152 = scalar_select %p151, %s21, 1
          %s153 = smul.addr %s152, 8
          %s154 = scalar_lea.vmem %s1, %s153
        $region24: #{tpu_custom_call.1} parent=15 // pred_fallthru
          _
      $region16: #{tpu_custom_call.1} parent=5 // pred_fallthru
        _
      %p155 = scmp.le.s32.totalorder 1, %s14
      %p156 = scmp.lt.s32.totalorder %s14, 3
      %p157 = pnand %p155, %p156
      %p158 = pneg %p157
      // Predicated region
      $region25: #{tpu_custom_call.1} parent=5 // pred_check
        _
      $region26: #{tpu_custom_call.1} parent=5 // pred_check_branch
        %160 = sbr.rel (%p157) target = $region28
      $region27: #{tpu_custom_call.1} parent=5 // pred_region
        %s161 = ssub.s32 %s14, 1
        %s162 = sand.u32 %s41, 1
        %s163 = scalar_lea.sflag [#allocation3], %s162
        %s164 = sand.u32 %s41, 1
        %s165 = smul.addr %s164, 2048
        %s166 = scalar_lea.vmem [#allocation2], %s165
        // Predicated region
        $region29: #{tpu_custom_call.1} parent=27 // pred_check
          %p167 = pneg %p54
        $region30: #{tpu_custom_call.1} parent=27 // pred_check_branch
          %169 = sbr.rel (%p167) target = $region32
        $region31: #{tpu_custom_call.1} parent=27 // pred_region
          %170 = dma.done %s163, 32768
        $region32: #{tpu_custom_call.1} parent=27 // pred_fallthru
          _
        %s171 = sand.u32 %s41, 1
        %s172 = scalar_lea.sflag [#allocation3], %s171
        %s173 = sand.u32 %s41, 1
        %s174 = smul.addr %s173, 2048
        %s175 = scalar_lea.vmem [#allocation2], %s174
        %p176 = pneg %p54
        %p177 = pneg %p51
        %p178 = scmp.lt.s32.totalorder %s23, 1
        %s179 = scalar_select %p178, %s23, 1
        %s180 = smul.addr %s179, 8
        %s181 = scalar_lea.vmem %s1, %s180
        %p182 = pneg %p80
        %p183 = pneg %p77
        %p184 = pneg %p108
        %p185 = pneg %p105
        %s186 = sand.u32 %s95, 1
        %s187 = scalar_lea.sflag [#allocation4], %s186
        %s188 = sand.u32 %s95, 1
        %s189 = smul.addr %s188, 2048
        %s190 = scalar_lea.vmem [#allocation5], %s189
        %s191 = smul.u32 256, %s24
        %p192 = scmp.lt.s32.totalorder %s23, 1
        %s193 = scalar_select %p192, %s23, 1
        %s194 = smul.addr %s193, 8
        %s195 = scalar_lea.vmem %s1, %s194
        %s196 = smul.u32 256, %s24
        %v197 = vld [vmem:[%s166] sm:$0xff]
        %v198 = vld [vmem:[%s166 + $0x8] sm:$0xff]
        %v199 = vld [vmem:[%s166 + $0x10] sm:$0xff]
        %v200 = vld [vmem:[%s166 + $0x18] sm:$0xff]
        %v201 = vld [vmem:[%s166 + $0x20] sm:$0xff]
        %v202 = vld [vmem:[%s166 + $0x28] sm:$0xff]
        %v203 = vld [vmem:[%s166 + $0x30] sm:$0xff]
        %v204 = vld [vmem:[%s166 + $0x38] sm:$0xff]
        %v205 = vld [vmem:[%s166 + $0x40] sm:$0xff]
        %v206 = vld [vmem:[%s166 + $0x48] sm:$0xff]
        %v207 = vld [vmem:[%s166 + $0x50] sm:$0xff]
        %v208 = vld [vmem:[%s166 + $0x58] sm:$0xff]
        %v209 = vld [vmem:[%s166 + $0x60] sm:$0xff]
        %v210 = vld [vmem:[%s166 + $0x68] sm:$0xff]
        %v211 = vld [vmem:[%s166 + $0x70] sm:$0xff]
        %v212 = vld [vmem:[%s166 + $0x78] sm:$0xff]
        %v213 = vld [vmem:[%s166 + $0x80] sm:$0xff]
        %v214 = vld [vmem:[%s166 + $0x88] sm:$0xff]
        %v215 = vld [vmem:[%s166 + $0x90] sm:$0xff]
        %v216 = vld [vmem:[%s166 + $0x98] sm:$0xff]
        %v217 = vld [vmem:[%s166 + $0xa0] sm:$0xff]
        %v218 = vld [vmem:[%s166 + $0xa8] sm:$0xff]
        %v219 = vld [vmem:[%s166 + $0xb0] sm:$0xff]
        %v220 = vld [vmem:[%s166 + $0xb8] sm:$0xff]
        %v221 = vld [vmem:[%s166 + $0xc0] sm:$0xff]
        %v222 = vld [vmem:[%s166 + $0xc8] sm:$0xff]
        %v223 = vld [vmem:[%s166 + $0xd0] sm:$0xff]
        %v224 = vld [vmem:[%s166 + $0xd8] sm:$0xff]
        %v225 = vld [vmem:[%s166 + $0xe0] sm:$0xff]
        %v226 = vld [vmem:[%s166 + $0xe8] sm:$0xff]
        %v227 = vld [vmem:[%s166 + $0xf0] sm:$0xff]
        %v228 = vld [vmem:[%s166 + $0xf8] sm:$0xff]
        %v229 = vld [vmem:[%s166 + $0x100] sm:$0xff]
        %v230 = vld [vmem:[%s166 + $0x108] sm:$0xff]
        %v231 = vld [vmem:[%s166 + $0x110] sm:$0xff]
        %v232 = vld [vmem:[%s166 + $0x118] sm:$0xff]
        %v233 = vld [vmem:[%s166 + $0x120] sm:$0xff]
        %v234 = vld [vmem:[%s166 + $0x128] sm:$0xff]
        %v235 = vld [vmem:[%s166 + $0x130] sm:$0xff]
        %v236 = vld [vmem:[%s166 + $0x138] sm:$0xff]
        %v237 = vld [vmem:[%s166 + $0x140] sm:$0xff]
        %v238 = vld [vmem:[%s166 + $0x148] sm:$0xff]
        %v239 = vld [vmem:[%s166 + $0x150] sm:$0xff]
        %v240 = vld [vmem:[%s166 + $0x158] sm:$0xff]
        %v241 = vld [vmem:[%s166 + $0x160] sm:$0xff]
        %v242 = vld [vmem:[%s166 + $0x168] sm:$0xff]
        %v243 = vld [vmem:[%s166 + $0x170] sm:$0xff]
        %v244 = vld [vmem:[%s166 + $0x178] sm:$0xff]
        %v245 = vld [vmem:[%s166 + $0x180] sm:$0xff]
        %v246 = vld [vmem:[%s166 + $0x188] sm:$0xff]
        %v247 = vld [vmem:[%s166 + $0x190] sm:$0xff]
        %v248 = vld [vmem:[%s166 + $0x198] sm:$0xff]
        %v249 = vld [vmem:[%s166 + $0x1a0] sm:$0xff]
        %v250 = vld [vmem:[%s166 + $0x1a8] sm:$0xff]
        %v251 = vld [vmem:[%s166 + $0x1b0] sm:$0xff]
        %v252 = vld [vmem:[%s166 + $0x1b8] sm:$0xff]
        %v253 = vld [vmem:[%s166 + $0x1c0] sm:$0xff]
        %v254 = vld [vmem:[%s166 + $0x1c8] sm:$0xff]
        %v255 = vld [vmem:[%s166 + $0x1d0] sm:$0xff]
        %v256 = vld [vmem:[%s166 + $0x1d8] sm:$0xff]
        %v257 = vld [vmem:[%s166 + $0x1e0] sm:$0xff]
        %v258 = vld [vmem:[%s166 + $0x1e8] sm:$0xff]
        %v259 = vld [vmem:[%s166 + $0x1f0] sm:$0xff]
        %v260 = vld [vmem:[%s166 + $0x1f8] sm:$0xff]
        %v261 = vld [vmem:[%s166 + $0x200] sm:$0xff]
        %v262 = vld [vmem:[%s166 + $0x208] sm:$0xff]
        %v263 = vld [vmem:[%s166 + $0x210] sm:$0xff]
        %v264 = vld [vmem:[%s166 + $0x218] sm:$0xff]
        %v265 = vld [vmem:[%s166 + $0x220] sm:$0xff]
        %v266 = vld [vmem:[%s166 + $0x228] sm:$0xff]
        %v267 = vld [vmem:[%s166 + $0x230] sm:$0xff]
        %v268 = vld [vmem:[%s166 + $0x238] sm:$0xff]
        %v269 = vld [vmem:[%s166 + $0x240] sm:$0xff]
        %v270 = vld [vmem:[%s166 + $0x248] sm:$0xff]
        %v271 = vld [vmem:[%s166 + $0x250] sm:$0xff]
        %v272 = vld [vmem:[%s166 + $0x258] sm:$0xff]
        %v273 = vld [vmem:[%s166 + $0x260] sm:$0xff]
        %v274 = vld [vmem:[%s166 + $0x268] sm:$0xff]
        %v275 = vld [vmem:[%s166 + $0x270] sm:$0xff]
        %v276 = vld [vmem:[%s166 + $0x278] sm:$0xff]
        %v277 = vld [vmem:[%s166 + $0x280] sm:$0xff]
        %v278 = vld [vmem:[%s166 + $0x288] sm:$0xff]
        %v279 = vld [vmem:[%s166 + $0x290] sm:$0xff]
        %v280 = vld [vmem:[%s166 + $0x298] sm:$0xff]
        %v281 = vld [vmem:[%s166 + $0x2a0] sm:$0xff]
        %v282 = vld [vmem:[%s166 + $0x2a8] sm:$0xff]
        %v283 = vld [vmem:[%s166 + $0x2b0] sm:$0xff]
        %v284 = vld [vmem:[%s166 + $0x2b8] sm:$0xff]
        %v285 = vld [vmem:[%s166 + $0x2c0] sm:$0xff]
        %v286 = vld [vmem:[%s166 + $0x2c8] sm:$0xff]
        %v287 = vld [vmem:[%s166 + $0x2d0] sm:$0xff]
        %v288 = vld [vmem:[%s166 + $0x2d8] sm:$0xff]
        %v289 = vld [vmem:[%s166 + $0x2e0] sm:$0xff]
        %v290 = vld [vmem:[%s166 + $0x2e8] sm:$0xff]
        %v291 = vld [vmem:[%s166 + $0x2f0] sm:$0xff]
        %v292 = vld [vmem:[%s166 + $0x2f8] sm:$0xff]
        %v293 = vld [vmem:[%s166 + $0x300] sm:$0xff]
        %v294 = vld [vmem:[%s166 + $0x308] sm:$0xff]
        %v295 = vld [vmem:[%s166 + $0x310] sm:$0xff]
        %v296 = vld [vmem:[%s166 + $0x318] sm:$0xff]
        %v297 = vld [vmem:[%s166 + $0x320] sm:$0xff]
        %v298 = vld [vmem:[%s166 + $0x328] sm:$0xff]
        %v299 = vld [vmem:[%s166 + $0x330] sm:$0xff]
        %v300 = vld [vmem:[%s166 + $0x338] sm:$0xff]
        %v301 = vld [vmem:[%s166 + $0x340] sm:$0xff]
        %v302 = vld [vmem:[%s166 + $0x348] sm:$0xff]
        %v303 = vld [vmem:[%s166 + $0x350] sm:$0xff]
        %v304 = vld [vmem:[%s166 + $0x358] sm:$0xff]
        %v305 = vld [vmem:[%s166 + $0x360] sm:$0xff]
        %v306 = vld [vmem:[%s166 + $0x368] sm:$0xff]
        %v307 = vld [vmem:[%s166 + $0x370] sm:$0xff]
        %v308 = vld [vmem:[%s166 + $0x378] sm:$0xff]
        %v309 = vld [vmem:[%s166 + $0x380] sm:$0xff]
        %v310 = vld [vmem:[%s166 + $0x388] sm:$0xff]
        %v311 = vld [vmem:[%s166 + $0x390] sm:$0xff]
        %v312 = vld [vmem:[%s166 + $0x398] sm:$0xff]
        %v313 = vld [vmem:[%s166 + $0x3a0] sm:$0xff]
        %v314 = vld [vmem:[%s166 + $0x3a8] sm:$0xff]
        %v315 = vld [vmem:[%s166 + $0x3b0] sm:$0xff]
        %v316 = vld [vmem:[%s166 + $0x3b8] sm:$0xff]
        %v317 = vld [vmem:[%s166 + $0x3c0] sm:$0xff]
        %v318 = vld [vmem:[%s166 + $0x3c8] sm:$0xff]
        %v319 = vld [vmem:[%s166 + $0x3d0] sm:$0xff]
        %v320 = vld [vmem:[%s166 + $0x3d8] sm:$0xff]
        %v321 = vld [vmem:[%s166 + $0x3e0] sm:$0xff]
        %v322 = vld [vmem:[%s166 + $0x3e8] sm:$0xff]
        %v323 = vld [vmem:[%s166 + $0x3f0] sm:$0xff]
        %v324 = vld [vmem:[%s166 + $0x3f8] sm:$0xff]
        %v325 = vld [vmem:[%s166 + $0x400] sm:$0xff]
        %v326 = vld [vmem:[%s166 + $0x408] sm:$0xff]
        %v327 = vld [vmem:[%s166 + $0x410] sm:$0xff]
        %v328 = vld [vmem:[%s166 + $0x418] sm:$0xff]
        %v329 = vld [vmem:[%s166 + $0x420] sm:$0xff]
        %v330 = vld [vmem:[%s166 + $0x428] sm:$0xff]
        %v331 = vld [vmem:[%s166 + $0x430] sm:$0xff]
        %v332 = vld [vmem:[%s166 + $0x438] sm:$0xff]
        %v333 = vld [vmem:[%s166 + $0x440] sm:$0xff]
        %v334 = vld [vmem:[%s166 + $0x448] sm:$0xff]
        %v335 = vld [vmem:[%s166 + $0x450] sm:$0xff]
        %v336 = vld [vmem:[%s166 + $0x458] sm:$0xff]
        %v337 = vld [vmem:[%s166 + $0x460] sm:$0xff]
        %v338 = vld [vmem:[%s166 + $0x468] sm:$0xff]
        %v339 = vld [vmem:[%s166 + $0x470] sm:$0xff]
        %v340 = vld [vmem:[%s166 + $0x478] sm:$0xff]
        %v341 = vld [vmem:[%s166 + $0x480] sm:$0xff]
        %v342 = vld [vmem:[%s166 + $0x488] sm:$0xff]
        %v343 = vld [vmem:[%s166 + $0x490] sm:$0xff]
        %v344 = vld [vmem:[%s166 + $0x498] sm:$0xff]
        %v345 = vld [vmem:[%s166 + $0x4a0] sm:$0xff]
        %v346 = vld [vmem:[%s166 + $0x4a8] sm:$0xff]
        %v347 = vld [vmem:[%s166 + $0x4b0] sm:$0xff]
        %v348 = vld [vmem:[%s166 + $0x4b8] sm:$0xff]
        %v349 = vld [vmem:[%s166 + $0x4c0] sm:$0xff]
        %v350 = vld [vmem:[%s166 + $0x4c8] sm:$0xff]
        %v351 = vld [vmem:[%s166 + $0x4d0] sm:$0xff]
        %v352 = vld [vmem:[%s166 + $0x4d8] sm:$0xff]
        %v353 = vld [vmem:[%s166 + $0x4e0] sm:$0xff]
        %v354 = vld [vmem:[%s166 + $0x4e8] sm:$0xff]
        %v355 = vld [vmem:[%s166 + $0x4f0] sm:$0xff]
        %v356 = vld [vmem:[%s166 + $0x4f8] sm:$0xff]
        %v357 = vld [vmem:[%s166 + $0x500] sm:$0xff]
        %v358 = vld [vmem:[%s166 + $0x508] sm:$0xff]
        %v359 = vld [vmem:[%s166 + $0x510] sm:$0xff]
        %v360 = vld [vmem:[%s166 + $0x518] sm:$0xff]
        %v361 = vld [vmem:[%s166 + $0x520] sm:$0xff]
        %v362 = vld [vmem:[%s166 + $0x528] sm:$0xff]
        %v363 = vld [vmem:[%s166 + $0x530] sm:$0xff]
        %v364 = vld [vmem:[%s166 + $0x538] sm:$0xff]
        %v365 = vld [vmem:[%s166 + $0x540] sm:$0xff]
        %v366 = vld [vmem:[%s166 + $0x548] sm:$0xff]
        %v367 = vld [vmem:[%s166 + $0x550] sm:$0xff]
        %v368 = vld [vmem:[%s166 + $0x558] sm:$0xff]
        %v369 = vld [vmem:[%s166 + $0x560] sm:$0xff]
        %v370 = vld [vmem:[%s166 + $0x568] sm:$0xff]
        %v371 = vld [vmem:[%s166 + $0x570] sm:$0xff]
        %v372 = vld [vmem:[%s166 + $0x578] sm:$0xff]
        %v373 = vld [vmem:[%s166 + $0x580] sm:$0xff]
        %v374 = vld [vmem:[%s166 + $0x588] sm:$0xff]
        %v375 = vld [vmem:[%s166 + $0x590] sm:$0xff]
        %v376 = vld [vmem:[%s166 + $0x598] sm:$0xff]
        %v377 = vld [vmem:[%s166 + $0x5a0] sm:$0xff]
        %v378 = vld [vmem:[%s166 + $0x5a8] sm:$0xff]
        %v379 = vld [vmem:[%s166 + $0x5b0] sm:$0xff]
        %v380 = vld [vmem:[%s166 + $0x5b8] sm:$0xff]
        %v381 = vld [vmem:[%s166 + $0x5c0] sm:$0xff]
        %v382 = vld [vmem:[%s166 + $0x5c8] sm:$0xff]
        %v383 = vld [vmem:[%s166 + $0x5d0] sm:$0xff]
        %v384 = vld [vmem:[%s166 + $0x5d8] sm:$0xff]
        %v385 = vld [vmem:[%s166 + $0x5e0] sm:$0xff]
        %v386 = vld [vmem:[%s166 + $0x5e8] sm:$0xff]
        %v387 = vld [vmem:[%s166 + $0x5f0] sm:$0xff]
        %v388 = vld [vmem:[%s166 + $0x5f8] sm:$0xff]
        %v389 = vld [vmem:[%s166 + $0x600] sm:$0xff]
        %v390 = vld [vmem:[%s166 + $0x608] sm:$0xff]
        %v391 = vld [vmem:[%s166 + $0x610] sm:$0xff]
        %v392 = vld [vmem:[%s166 + $0x618] sm:$0xff]
        %v393 = vld [vmem:[%s166 + $0x620] sm:$0xff]
        %v394 = vld [vmem:[%s166 + $0x628] sm:$0xff]
        %v395 = vld [vmem:[%s166 + $0x630] sm:$0xff]
        %v396 = vld [vmem:[%s166 + $0x638] sm:$0xff]
        %v397 = vld [vmem:[%s166 + $0x640] sm:$0xff]
        %v398 = vld [vmem:[%s166 + $0x648] sm:$0xff]
        %v399 = vld [vmem:[%s166 + $0x650] sm:$0xff]
        %v400 = vld [vmem:[%s166 + $0x658] sm:$0xff]
        %v401 = vld [vmem:[%s166 + $0x660] sm:$0xff]
        %v402 = vld [vmem:[%s166 + $0x668] sm:$0xff]
        %v403 = vld [vmem:[%s166 + $0x670] sm:$0xff]
        %v404 = vld [vmem:[%s166 + $0x678] sm:$0xff]
        %v405 = vld [vmem:[%s166 + $0x680] sm:$0xff]
        %v406 = vld [vmem:[%s166 + $0x688] sm:$0xff]
        %v407 = vld [vmem:[%s166 + $0x690] sm:$0xff]
        %v408 = vld [vmem:[%s166 + $0x698] sm:$0xff]
        %v409 = vld [vmem:[%s166 + $0x6a0] sm:$0xff]
        %v410 = vld [vmem:[%s166 + $0x6a8] sm:$0xff]
        %v411 = vld [vmem:[%s166 + $0x6b0] sm:$0xff]
        %v412 = vld [vmem:[%s166 + $0x6b8] sm:$0xff]
        %v413 = vld [vmem:[%s166 + $0x6c0] sm:$0xff]
        %v414 = vld [vmem:[%s166 + $0x6c8] sm:$0xff]
        %v415 = vld [vmem:[%s166 + $0x6d0] sm:$0xff]
        %v416 = vld [vmem:[%s166 + $0x6d8] sm:$0xff]
        %v417 = vld [vmem:[%s166 + $0x6e0] sm:$0xff]
        %v418 = vld [vmem:[%s166 + $0x6e8] sm:$0xff]
        %v419 = vld [vmem:[%s166 + $0x6f0] sm:$0xff]
        %v420 = vld [vmem:[%s166 + $0x6f8] sm:$0xff]
        %v421 = vld [vmem:[%s166 + $0x700] sm:$0xff]
        %v422 = vld [vmem:[%s166 + $0x708] sm:$0xff]
        %v423 = vld [vmem:[%s166 + $0x710] sm:$0xff]
        %v424 = vld [vmem:[%s166 + $0x718] sm:$0xff]
        %v425 = vld [vmem:[%s166 + $0x720] sm:$0xff]
        %v426 = vld [vmem:[%s166 + $0x728] sm:$0xff]
        %v427 = vld [vmem:[%s166 + $0x730] sm:$0xff]
        %v428 = vld [vmem:[%s166 + $0x738] sm:$0xff]
        %v429 = vld [vmem:[%s166 + $0x740] sm:$0xff]
        %v430 = vld [vmem:[%s166 + $0x748] sm:$0xff]
        %v431 = vld [vmem:[%s166 + $0x750] sm:$0xff]
        %v432 = vld [vmem:[%s166 + $0x758] sm:$0xff]
        %v433 = vld [vmem:[%s166 + $0x760] sm:$0xff]
        %v434 = vld [vmem:[%s166 + $0x768] sm:$0xff]
        %v435 = vld [vmem:[%s166 + $0x770] sm:$0xff]
        %v436 = vld [vmem:[%s166 + $0x778] sm:$0xff]
        %v437 = vld [vmem:[%s166 + $0x780] sm:$0xff]
        %v438 = vld [vmem:[%s166 + $0x788] sm:$0xff]
        %v439 = vld [vmem:[%s166 + $0x790] sm:$0xff]
        %v440 = vld [vmem:[%s166 + $0x798] sm:$0xff]
        %v441 = vld [vmem:[%s166 + $0x7a0] sm:$0xff]
        %v442 = vld [vmem:[%s166 + $0x7a8] sm:$0xff]
        %v443 = vld [vmem:[%s166 + $0x7b0] sm:$0xff]
        %v444 = vld [vmem:[%s166 + $0x7b8] sm:$0xff]
        %v445 = vld [vmem:[%s166 + $0x7c0] sm:$0xff]
        %v446 = vld [vmem:[%s166 + $0x7c8] sm:$0xff]
        %v447 = vld [vmem:[%s166 + $0x7d0] sm:$0xff]
        %v448 = vld [vmem:[%s166 + $0x7d8] sm:$0xff]
        %v449 = vld [vmem:[%s166 + $0x7e0] sm:$0xff]
        %v450 = vld [vmem:[%s166 + $0x7e8] sm:$0xff]
        %v451 = vld [vmem:[%s166 + $0x7f0] sm:$0xff]
        %v452 = vld [vmem:[%s166 + $0x7f8] sm:$0xff]
        %v453 = vld [vmem:[%s195] sm:$0xff]
        %455 = vset.pattern.permute.xlu0 0
        %456 = vperm.xlu0 %455, %v453
        %v457 = vpop.permute.xlu0 %456
        %v459 = vmul.f32 %v197, %v457
        %v460 = vmul.f32 %v198, %v457
        %v461 = vmul.f32 %v199, %v457
        %v462 = vmul.f32 %v200, %v457
        %v463 = vmul.f32 %v201, %v457
        %v464 = vmul.f32 %v202, %v457
        %v465 = vmul.f32 %v203, %v457
        %v466 = vmul.f32 %v204, %v457
        %v467 = vmul.f32 %v205, %v457
        %v468 = vmul.f32 %v206, %v457
        %v469 = vmul.f32 %v207, %v457
        %v470 = vmul.f32 %v208, %v457
        %v471 = vmul.f32 %v209, %v457
        %v472 = vmul.f32 %v210, %v457
        %v473 = vmul.f32 %v211, %v457
        %v474 = vmul.f32 %v212, %v457
        %v475 = vmul.f32 %v213, %v457
        %v476 = vmul.f32 %v214, %v457
        %v477 = vmul.f32 %v215, %v457
        %v478 = vmul.f32 %v216, %v457
        %v479 = vmul.f32 %v217, %v457
        %v480 = vmul.f32 %v218, %v457
        %v481 = vmul.f32 %v219, %v457
        %v482 = vmul.f32 %v220, %v457
        %v483 = vmul.f32 %v221, %v457
        %v484 = vmul.f32 %v222, %v457
        %v485 = vmul.f32 %v223, %v457
        %v486 = vmul.f32 %v224, %v457
        %v487 = vmul.f32 %v225, %v457
        %v488 = vmul.f32 %v226, %v457
        %v489 = vmul.f32 %v227, %v457
        %v490 = vmul.f32 %v228, %v457
        %v491 = vmul.f32 %v229, %v457
        %v492 = vmul.f32 %v230, %v457
        %v493 = vmul.f32 %v231, %v457
        %v494 = vmul.f32 %v232, %v457
        %v495 = vmul.f32 %v233, %v457
        %v496 = vmul.f32 %v234, %v457
        %v497 = vmul.f32 %v235, %v457
        %v498 = vmul.f32 %v236, %v457
        %v499 = vmul.f32 %v237, %v457
        %v500 = vmul.f32 %v238, %v457
        %v501 = vmul.f32 %v239, %v457
        %v502 = vmul.f32 %v240, %v457
        %v503 = vmul.f32 %v241, %v457
        %v504 = vmul.f32 %v242, %v457
        %v505 = vmul.f32 %v243, %v457
        %v506 = vmul.f32 %v244, %v457
        %v507 = vmul.f32 %v245, %v457
        %v508 = vmul.f32 %v246, %v457
        %v509 = vmul.f32 %v247, %v457
        %v510 = vmul.f32 %v248, %v457
        %v511 = vmul.f32 %v249, %v457
        %v512 = vmul.f32 %v250, %v457
        %v513 = vmul.f32 %v251, %v457
        %v514 = vmul.f32 %v252, %v457
        %v515 = vmul.f32 %v253, %v457
        %v516 = vmul.f32 %v254, %v457
        %v517 = vmul.f32 %v255, %v457
        %v518 = vmul.f32 %v256, %v457
        %v519 = vmul.f32 %v257, %v457
        %v520 = vmul.f32 %v258, %v457
        %v521 = vmul.f32 %v259, %v457
        %v522 = vmul.f32 %v260, %v457
        %v523 = vmul.f32 %v261, %v457
        %v524 = vmul.f32 %v262, %v457
        %v525 = vmul.f32 %v263, %v457
        %v526 = vmul.f32 %v264, %v457
        %v527 = vmul.f32 %v265, %v457
        %v528 = vmul.f32 %v266, %v457
        %v529 = vmul.f32 %v267, %v457
        %v530 = vmul.f32 %v268, %v457
        %v531 = vmul.f32 %v269, %v457
        %v532 = vmul.f32 %v270, %v457
        %v533 = vmul.f32 %v271, %v457
        %v534 = vmul.f32 %v272, %v457
        %v535 = vmul.f32 %v273, %v457
        %v536 = vmul.f32 %v274, %v457
        %v537 = vmul.f32 %v275, %v457
        %v538 = vmul.f32 %v276, %v457
        %v539 = vmul.f32 %v277, %v457
        %v540 = vmul.f32 %v278, %v457
        %v541 = vmul.f32 %v279, %v457
        %v542 = vmul.f32 %v280, %v457
        %v543 = vmul.f32 %v281, %v457
        %v544 = vmul.f32 %v282, %v457
        %v545 = vmul.f32 %v283, %v457
        %v546 = vmul.f32 %v284, %v457
        %v547 = vmul.f32 %v285, %v457
        %v548 = vmul.f32 %v286, %v457
        %v549 = vmul.f32 %v287, %v457
        %v550 = vmul.f32 %v288, %v457
        %v551 = vmul.f32 %v289, %v457
        %v552 = vmul.f32 %v290, %v457
        %v553 = vmul.f32 %v291, %v457
        %v554 = vmul.f32 %v292, %v457
        %v555 = vmul.f32 %v293, %v457
        %v556 = vmul.f32 %v294, %v457
        %v557 = vmul.f32 %v295, %v457
        %v558 = vmul.f32 %v296, %v457
        %v559 = vmul.f32 %v297, %v457
        %v560 = vmul.f32 %v298, %v457
        %v561 = vmul.f32 %v299, %v457
        %v562 = vmul.f32 %v300, %v457
        %v563 = vmul.f32 %v301, %v457
        %v564 = vmul.f32 %v302, %v457
        %v565 = vmul.f32 %v303, %v457
        %v566 = vmul.f32 %v304, %v457
        %v567 = vmul.f32 %v305, %v457
        %v568 = vmul.f32 %v306, %v457
        %v569 = vmul.f32 %v307, %v457
        %v570 = vmul.f32 %v308, %v457
        %v571 = vmul.f32 %v309, %v457
        %v572 = vmul.f32 %v310, %v457
        %v573 = vmul.f32 %v311, %v457
        %v574 = vmul.f32 %v312, %v457
        %v575 = vmul.f32 %v313, %v457
        %v576 = vmul.f32 %v314, %v457
        %v577 = vmul.f32 %v315, %v457
        %v578 = vmul.f32 %v316, %v457
        %v579 = vmul.f32 %v317, %v457
        %v580 = vmul.f32 %v318, %v457
        %v581 = vmul.f32 %v319, %v457
        %v582 = vmul.f32 %v320, %v457
        %v583 = vmul.f32 %v321, %v457
        %v584 = vmul.f32 %v322, %v457
        %v585 = vmul.f32 %v323, %v457
        %v586 = vmul.f32 %v324, %v457
        %v587 = vmul.f32 %v325, %v457
        %v588 = vmul.f32 %v326, %v457
        %v589 = vmul.f32 %v327, %v457
        %v590 = vmul.f32 %v328, %v457
        %v591 = vmul.f32 %v329, %v457
        %v592 = vmul.f32 %v330, %v457
        %v593 = vmul.f32 %v331, %v457
        %v594 = vmul.f32 %v332, %v457
        %v595 = vmul.f32 %v333, %v457
        %v596 = vmul.f32 %v334, %v457
        %v597 = vmul.f32 %v335, %v457
        %v598 = vmul.f32 %v336, %v457
        %v599 = vmul.f32 %v337, %v457
        %v600 = vmul.f32 %v338, %v457
        %v601 = vmul.f32 %v339, %v457
        %v602 = vmul.f32 %v340, %v457
        %v603 = vmul.f32 %v341, %v457
        %v604 = vmul.f32 %v342, %v457
        %v605 = vmul.f32 %v343, %v457
        %v606 = vmul.f32 %v344, %v457
        %v607 = vmul.f32 %v345, %v457
        %v608 = vmul.f32 %v346, %v457
        %v609 = vmul.f32 %v347, %v457
        %v610 = vmul.f32 %v348, %v457
        %v611 = vmul.f32 %v349, %v457
        %v612 = vmul.f32 %v350, %v457
        %v613 = vmul.f32 %v351, %v457
        %v614 = vmul.f32 %v352, %v457
        %v615 = vmul.f32 %v353, %v457
        %v616 = vmul.f32 %v354, %v457
        %v617 = vmul.f32 %v355, %v457
        %v618 = vmul.f32 %v356, %v457
        %v619 = vmul.f32 %v357, %v457
        %v620 = vmul.f32 %v358, %v457
        %v621 = vmul.f32 %v359, %v457
        %v622 = vmul.f32 %v360, %v457
        %v623 = vmul.f32 %v361, %v457
        %v624 = vmul.f32 %v362, %v457
        %v625 = vmul.f32 %v363, %v457
        %v626 = vmul.f32 %v364, %v457
        %v627 = vmul.f32 %v365, %v457
        %v628 = vmul.f32 %v366, %v457
        %v629 = vmul.f32 %v367, %v457
        %v630 = vmul.f32 %v368, %v457
        %v631 = vmul.f32 %v369, %v457
        %v632 = vmul.f32 %v370, %v457
        %v633 = vmul.f32 %v371, %v457
        %v634 = vmul.f32 %v372, %v457
        %v635 = vmul.f32 %v373, %v457
        %v636 = vmul.f32 %v374, %v457
        %v637 = vmul.f32 %v375, %v457
        %v638 = vmul.f32 %v376, %v457
        %v639 = vmul.f32 %v377, %v457
        %v640 = vmul.f32 %v378, %v457
        %v641 = vmul.f32 %v379, %v457
        %v642 = vmul.f32 %v380, %v457
        %v643 = vmul.f32 %v381, %v457
        %v644 = vmul.f32 %v382, %v457
        %v645 = vmul.f32 %v383, %v457
        %v646 = vmul.f32 %v384, %v457
        %v647 = vmul.f32 %v385, %v457
        %v648 = vmul.f32 %v386, %v457
        %v649 = vmul.f32 %v387, %v457
        %v650 = vmul.f32 %v388, %v457
        %v651 = vmul.f32 %v389, %v457
        %v652 = vmul.f32 %v390, %v457
        %v653 = vmul.f32 %v391, %v457
        %v654 = vmul.f32 %v392, %v457
        %v655 = vmul.f32 %v393, %v457
        %v656 = vmul.f32 %v394, %v457
        %v657 = vmul.f32 %v395, %v457
        %v658 = vmul.f32 %v396, %v457
        %v659 = vmul.f32 %v397, %v457
        %v660 = vmul.f32 %v398, %v457
        %v661 = vmul.f32 %v399, %v457
        %v662 = vmul.f32 %v400, %v457
        %v663 = vmul.f32 %v401, %v457
        %v664 = vmul.f32 %v402, %v457
        %v665 = vmul.f32 %v403, %v457
        %v666 = vmul.f32 %v404, %v457
        %v667 = vmul.f32 %v405, %v457
        %v668 = vmul.f32 %v406, %v457
        %v669 = vmul.f32 %v407, %v457
        %v670 = vmul.f32 %v408, %v457
        %v671 = vmul.f32 %v409, %v457
        %v672 = vmul.f32 %v410, %v457
        %v673 = vmul.f32 %v411, %v457
        %v674 = vmul.f32 %v412, %v457
        %v675 = vmul.f32 %v413, %v457
        %v676 = vmul.f32 %v414, %v457
        %v677 = vmul.f32 %v415, %v457
        %v678 = vmul.f32 %v416, %v457
        %v679 = vmul.f32 %v417, %v457
        %v680 = vmul.f32 %v418, %v457
        %v681 = vmul.f32 %v419, %v457
        %v682 = vmul.f32 %v420, %v457
        %v683 = vmul.f32 %v421, %v457
        %v684 = vmul.f32 %v422, %v457
        %v685 = vmul.f32 %v423, %v457
        %v686 = vmul.f32 %v424, %v457
        %v687 = vmul.f32 %v425, %v457
        %v688 = vmul.f32 %v426, %v457
        %v689 = vmul.f32 %v427, %v457
        %v690 = vmul.f32 %v428, %v457
        %v691 = vmul.f32 %v429, %v457
        %v692 = vmul.f32 %v430, %v457
        %v693 = vmul.f32 %v431, %v457
        %v694 = vmul.f32 %v432, %v457
        %v695 = vmul.f32 %v433, %v457
        %v696 = vmul.f32 %v434, %v457
        %v697 = vmul.f32 %v435, %v457
        %v698 = vmul.f32 %v436, %v457
        %v699 = vmul.f32 %v437, %v457
        %v700 = vmul.f32 %v438, %v457
        %v701 = vmul.f32 %v439, %v457
        %v702 = vmul.f32 %v440, %v457
        %v703 = vmul.f32 %v441, %v457
        %v704 = vmul.f32 %v442, %v457
        %v705 = vmul.f32 %v443, %v457
        %v706 = vmul.f32 %v444, %v457
        %v707 = vmul.f32 %v445, %v457
        %v708 = vmul.f32 %v446, %v457
        %v709 = vmul.f32 %v447, %v457
        %v710 = vmul.f32 %v448, %v457
        %v711 = vmul.f32 %v449, %v457
        %v712 = vmul.f32 %v450, %v457
        %v713 = vmul.f32 %v451, %v457
        %v714 = vmul.f32 %v452, %v457
        %715 = vst [vmem:[%s190] sm:$0xff] %v459
        %716 = vst [vmem:[%s190 + $0x8] sm:$0xff] %v460
        %717 = vst [vmem:[%s190 + $0x10] sm:$0xff] %v461
        %718 = vst [vmem:[%s190 + $0x18] sm:$0xff] %v462
        %719 = vst [vmem:[%s190 + $0x20] sm:$0xff] %v463
        %720 = vst [vmem:[%s190 + $0x28] sm:$0xff] %v464
        %721 = vst [vmem:[%s190 + $0x30] sm:$0xff] %v465
        %722 = vst [vmem:[%s190 + $0x38] sm:$0xff] %v466
        %723 = vst [vmem:[%s190 + $0x40] sm:$0xff] %v467
        %724 = vst [vmem:[%s190 + $0x48] sm:$0xff] %v468
        %725 = vst [vmem:[%s190 + $0x50] sm:$0xff] %v469
        %726 = vst [vmem:[%s190 + $0x58] sm:$0xff] %v470
        %727 = vst [vmem:[%s190 + $0x60] sm:$0xff] %v471
        %728 = vst [vmem:[%s190 + $0x68] sm:$0xff] %v472
        %729 = vst [vmem:[%s190 + $0x70] sm:$0xff] %v473
        %730 = vst [vmem:[%s190 + $0x78] sm:$0xff] %v474
        %731 = vst [vmem:[%s190 + $0x80] sm:$0xff] %v475
        %732 = vst [vmem:[%s190 + $0x88] sm:$0xff] %v476
        %733 = vst [vmem:[%s190 + $0x90] sm:$0xff] %v477
        %734 = vst [vmem:[%s190 + $0x98] sm:$0xff] %v478
        %735 = vst [vmem:[%s190 + $0xa0] sm:$0xff] %v479
        %736 = vst [vmem:[%s190 + $0xa8] sm:$0xff] %v480
        %737 = vst [vmem:[%s190 + $0xb0] sm:$0xff] %v481
        %738 = vst [vmem:[%s190 + $0xb8] sm:$0xff] %v482
        %739 = vst [vmem:[%s190 + $0xc0] sm:$0xff] %v483
        %740 = vst [vmem:[%s190 + $0xc8] sm:$0xff] %v484
        %741 = vst [vmem:[%s190 + $0xd0] sm:$0xff] %v485
        %742 = vst [vmem:[%s190 + $0xd8] sm:$0xff] %v486
        %743 = vst [vmem:[%s190 + $0xe0] sm:$0xff] %v487
        %744 = vst [vmem:[%s190 + $0xe8] sm:$0xff] %v488
        %745 = vst [vmem:[%s190 + $0xf0] sm:$0xff] %v489
        %746 = vst [vmem:[%s190 + $0xf8] sm:$0xff] %v490
        %747 = vst [vmem:[%s190 + $0x100] sm:$0xff] %v491
        %748 = vst [vmem:[%s190 + $0x108] sm:$0xff] %v492
        %749 = vst [vmem:[%s190 + $0x110] sm:$0xff] %v493
        %750 = vst [vmem:[%s190 + $0x118] sm:$0xff] %v494
        %751 = vst [vmem:[%s190 + $0x120] sm:$0xff] %v495
        %752 = vst [vmem:[%s190 + $0x128] sm:$0xff] %v496
        %753 = vst [vmem:[%s190 + $0x130] sm:$0xff] %v497
        %754 = vst [vmem:[%s190 + $0x138] sm:$0xff] %v498
        %755 = vst [vmem:[%s190 + $0x140] sm:$0xff] %v499
        %756 = vst [vmem:[%s190 + $0x148] sm:$0xff] %v500
        %757 = vst [vmem:[%s190 + $0x150] sm:$0xff] %v501
        %758 = vst [vmem:[%s190 + $0x158] sm:$0xff] %v502
        %759 = vst [vmem:[%s190 + $0x160] sm:$0xff] %v503
        %760 = vst [vmem:[%s190 + $0x168] sm:$0xff] %v504
        %761 = vst [vmem:[%s190 + $0x170] sm:$0xff] %v505
        %762 = vst [vmem:[%s190 + $0x178] sm:$0xff] %v506
        %763 = vst [vmem:[%s190 + $0x180] sm:$0xff] %v507
        %764 = vst [vmem:[%s190 + $0x188] sm:$0xff] %v508
        %765 = vst [vmem:[%s190 + $0x190] sm:$0xff] %v509
        %766 = vst [vmem:[%s190 + $0x198] sm:$0xff] %v510
        %767 = vst [vmem:[%s190 + $0x1a0] sm:$0xff] %v511
        %768 = vst [vmem:[%s190 + $0x1a8] sm:$0xff] %v512
        %769 = vst [vmem:[%s190 + $0x1b0] sm:$0xff] %v513
        %770 = vst [vmem:[%s190 + $0x1b8] sm:$0xff] %v514
        %771 = vst [vmem:[%s190 + $0x1c0] sm:$0xff] %v515
        %772 = vst [vmem:[%s190 + $0x1c8] sm:$0xff] %v516
        %773 = vst [vmem:[%s190 + $0x1d0] sm:$0xff] %v517
        %774 = vst [vmem:[%s190 + $0x1d8] sm:$0xff] %v518
        %775 = vst [vmem:[%s190 + $0x1e0] sm:$0xff] %v519
        %776 = vst [vmem:[%s190 + $0x1e8] sm:$0xff] %v520
        %777 = vst [vmem:[%s190 + $0x1f0] sm:$0xff] %v521
        %778 = vst [vmem:[%s190 + $0x1f8] sm:$0xff] %v522
        %779 = vst [vmem:[%s190 + $0x200] sm:$0xff] %v523
        %780 = vst [vmem:[%s190 + $0x208] sm:$0xff] %v524
        %781 = vst [vmem:[%s190 + $0x210] sm:$0xff] %v525
        %782 = vst [vmem:[%s190 + $0x218] sm:$0xff] %v526
        %783 = vst [vmem:[%s190 + $0x220] sm:$0xff] %v527
        %784 = vst [vmem:[%s190 + $0x228] sm:$0xff] %v528
        %785 = vst [vmem:[%s190 + $0x230] sm:$0xff] %v529
        %786 = vst [vmem:[%s190 + $0x238] sm:$0xff] %v530
        %787 = vst [vmem:[%s190 + $0x240] sm:$0xff] %v531
        %788 = vst [vmem:[%s190 + $0x248] sm:$0xff] %v532
        %789 = vst [vmem:[%s190 + $0x250] sm:$0xff] %v533
        %790 = vst [vmem:[%s190 + $0x258] sm:$0xff] %v534
        %791 = vst [vmem:[%s190 + $0x260] sm:$0xff] %v535
        %792 = vst [vmem:[%s190 + $0x268] sm:$0xff] %v536
        %793 = vst [vmem:[%s190 + $0x270] sm:$0xff] %v537
        %794 = vst [vmem:[%s190 + $0x278] sm:$0xff] %v538
        %795 = vst [vmem:[%s190 + $0x280] sm:$0xff] %v539
        %796 = vst [vmem:[%s190 + $0x288] sm:$0xff] %v540
        %797 = vst [vmem:[%s190 + $0x290] sm:$0xff] %v541
        %798 = vst [vmem:[%s190 + $0x298] sm:$0xff] %v542
        %799 = vst [vmem:[%s190 + $0x2a0] sm:$0xff] %v543
        %800 = vst [vmem:[%s190 + $0x2a8] sm:$0xff] %v544
        %801 = vst [vmem:[%s190 + $0x2b0] sm:$0xff] %v545
        %802 = vst [vmem:[%s190 + $0x2b8] sm:$0xff] %v546
        %803 = vst [vmem:[%s190 + $0x2c0] sm:$0xff] %v547
        %804 = vst [vmem:[%s190 + $0x2c8] sm:$0xff] %v548
        %805 = vst [vmem:[%s190 + $0x2d0] sm:$0xff] %v549
        %806 = vst [vmem:[%s190 + $0x2d8] sm:$0xff] %v550
        %807 = vst [vmem:[%s190 + $0x2e0] sm:$0xff] %v551
        %808 = vst [vmem:[%s190 + $0x2e8] sm:$0xff] %v552
        %809 = vst [vmem:[%s190 + $0x2f0] sm:$0xff] %v553
        %810 = vst [vmem:[%s190 + $0x2f8] sm:$0xff] %v554
        %811 = vst [vmem:[%s190 + $0x300] sm:$0xff] %v555
        %812 = vst [vmem:[%s190 + $0x308] sm:$0xff] %v556
        %813 = vst [vmem:[%s190 + $0x310] sm:$0xff] %v557
        %814 = vst [vmem:[%s190 + $0x318] sm:$0xff] %v558
        %815 = vst [vmem:[%s190 + $0x320] sm:$0xff] %v559
        %816 = vst [vmem:[%s190 + $0x328] sm:$0xff] %v560
        %817 = vst [vmem:[%s190 + $0x330] sm:$0xff] %v561
        %818 = vst [vmem:[%s190 + $0x338] sm:$0xff] %v562
        %819 = vst [vmem:[%s190 + $0x340] sm:$0xff] %v563
        %820 = vst [vmem:[%s190 + $0x348] sm:$0xff] %v564
        %821 = vst [vmem:[%s190 + $0x350] sm:$0xff] %v565
        %822 = vst [vmem:[%s190 + $0x358] sm:$0xff] %v566
        %823 = vst [vmem:[%s190 + $0x360] sm:$0xff] %v567
        %824 = vst [vmem:[%s190 + $0x368] sm:$0xff] %v568
        %825 = vst [vmem:[%s190 + $0x370] sm:$0xff] %v569
        %826 = vst [vmem:[%s190 + $0x378] sm:$0xff] %v570
        %827 = vst [vmem:[%s190 + $0x380] sm:$0xff] %v571
        %828 = vst [vmem:[%s190 + $0x388] sm:$0xff] %v572
        %829 = vst [vmem:[%s190 + $0x390] sm:$0xff] %v573
        %830 = vst [vmem:[%s190 + $0x398] sm:$0xff] %v574
        %831 = vst [vmem:[%s190 + $0x3a0] sm:$0xff] %v575
        %832 = vst [vmem:[%s190 + $0x3a8] sm:$0xff] %v576
        %833 = vst [vmem:[%s190 + $0x3b0] sm:$0xff] %v577
        %834 = vst [vmem:[%s190 + $0x3b8] sm:$0xff] %v578
        %835 = vst [vmem:[%s190 + $0x3c0] sm:$0xff] %v579
        %836 = vst [vmem:[%s190 + $0x3c8] sm:$0xff] %v580
        %837 = vst [vmem:[%s190 + $0x3d0] sm:$0xff] %v581
        %838 = vst [vmem:[%s190 + $0x3d8] sm:$0xff] %v582
        %839 = vst [vmem:[%s190 + $0x3e0] sm:$0xff] %v583
        %840 = vst [vmem:[%s190 + $0x3e8] sm:$0xff] %v584
        %841 = vst [vmem:[%s190 + $0x3f0] sm:$0xff] %v585
        %842 = vst [vmem:[%s190 + $0x3f8] sm:$0xff] %v586
        %843 = vst [vmem:[%s190 + $0x400] sm:$0xff] %v587
        %844 = vst [vmem:[%s190 + $0x408] sm:$0xff] %v588
        %845 = vst [vmem:[%s190 + $0x410] sm:$0xff] %v589
        %846 = vst [vmem:[%s190 + $0x418] sm:$0xff] %v590
        %847 = vst [vmem:[%s190 + $0x420] sm:$0xff] %v591
        %848 = vst [vmem:[%s190 + $0x428] sm:$0xff] %v592
        %849 = vst [vmem:[%s190 + $0x430] sm:$0xff] %v593
        %850 = vst [vmem:[%s190 + $0x438] sm:$0xff] %v594
        %851 = vst [vmem:[%s190 + $0x440] sm:$0xff] %v595
        %852 = vst [vmem:[%s190 + $0x448] sm:$0xff] %v596
        %853 = vst [vmem:[%s190 + $0x450] sm:$0xff] %v597
        %854 = vst [vmem:[%s190 + $0x458] sm:$0xff] %v598
        %855 = vst [vmem:[%s190 + $0x460] sm:$0xff] %v599
        %856 = vst [vmem:[%s190 + $0x468] sm:$0xff] %v600
        %857 = vst [vmem:[%s190 + $0x470] sm:$0xff] %v601
        %858 = vst [vmem:[%s190 + $0x478] sm:$0xff] %v602
        %859 = vst [vmem:[%s190 + $0x480] sm:$0xff] %v603
        %860 = vst [vmem:[%s190 + $0x488] sm:$0xff] %v604
        %861 = vst [vmem:[%s190 + $0x490] sm:$0xff] %v605
        %862 = vst [vmem:[%s190 + $0x498] sm:$0xff] %v606
        %863 = vst [vmem:[%s190 + $0x4a0] sm:$0xff] %v607
        %864 = vst [vmem:[%s190 + $0x4a8] sm:$0xff] %v608
        %865 = vst [vmem:[%s190 + $0x4b0] sm:$0xff] %v609
        %866 = vst [vmem:[%s190 + $0x4b8] sm:$0xff] %v610
        %867 = vst [vmem:[%s190 + $0x4c0] sm:$0xff] %v611
        %868 = vst [vmem:[%s190 + $0x4c8] sm:$0xff] %v612
        %869 = vst [vmem:[%s190 + $0x4d0] sm:$0xff] %v613
        %870 = vst [vmem:[%s190 + $0x4d8] sm:$0xff] %v614
        %871 = vst [vmem:[%s190 + $0x4e0] sm:$0xff] %v615
        %872 = vst [vmem:[%s190 + $0x4e8] sm:$0xff] %v616
        %873 = vst [vmem:[%s190 + $0x4f0] sm:$0xff] %v617
        %874 = vst [vmem:[%s190 + $0x4f8] sm:$0xff] %v618
        %875 = vst [vmem:[%s190 + $0x500] sm:$0xff] %v619
        %876 = vst [vmem:[%s190 + $0x508] sm:$0xff] %v620
        %877 = vst [vmem:[%s190 + $0x510] sm:$0xff] %v621
        %878 = vst [vmem:[%s190 + $0x518] sm:$0xff] %v622
        %879 = vst [vmem:[%s190 + $0x520] sm:$0xff] %v623
        %880 = vst [vmem:[%s190 + $0x528] sm:$0xff] %v624
        %881 = vst [vmem:[%s190 + $0x530] sm:$0xff] %v625
        %882 = vst [vmem:[%s190 + $0x538] sm:$0xff] %v626
        %883 = vst [vmem:[%s190 + $0x540] sm:$0xff] %v627
        %884 = vst [vmem:[%s190 + $0x548] sm:$0xff] %v628
        %885 = vst [vmem:[%s190 + $0x550] sm:$0xff] %v629
        %886 = vst [vmem:[%s190 + $0x558] sm:$0xff] %v630
        %887 = vst [vmem:[%s190 + $0x560] sm:$0xff] %v631
        %888 = vst [vmem:[%s190 + $0x568] sm:$0xff] %v632
        %889 = vst [vmem:[%s190 + $0x570] sm:$0xff] %v633
        %890 = vst [vmem:[%s190 + $0x578] sm:$0xff] %v634
        %891 = vst [vmem:[%s190 + $0x580] sm:$0xff] %v635
        %892 = vst [vmem:[%s190 + $0x588] sm:$0xff] %v636
        %893 = vst [vmem:[%s190 + $0x590] sm:$0xff] %v637
        %894 = vst [vmem:[%s190 + $0x598] sm:$0xff] %v638
        %895 = vst [vmem:[%s190 + $0x5a0] sm:$0xff] %v639
        %896 = vst [vmem:[%s190 + $0x5a8] sm:$0xff] %v640
        %897 = vst [vmem:[%s190 + $0x5b0] sm:$0xff] %v641
        %898 = vst [vmem:[%s190 + $0x5b8] sm:$0xff] %v642
        %899 = vst [vmem:[%s190 + $0x5c0] sm:$0xff] %v643
        %900 = vst [vmem:[%s190 + $0x5c8] sm:$0xff] %v644
        %901 = vst [vmem:[%s190 + $0x5d0] sm:$0xff] %v645
        %902 = vst [vmem:[%s190 + $0x5d8] sm:$0xff] %v646
        %903 = vst [vmem:[%s190 + $0x5e0] sm:$0xff] %v647
        %904 = vst [vmem:[%s190 + $0x5e8] sm:$0xff] %v648
        %905 = vst [vmem:[%s190 + $0x5f0] sm:$0xff] %v649
        %906 = vst [vmem:[%s190 + $0x5f8] sm:$0xff] %v650
        %907 = vst [vmem:[%s190 + $0x600] sm:$0xff] %v651
        %908 = vst [vmem:[%s190 + $0x608] sm:$0xff] %v652
        %909 = vst [vmem:[%s190 + $0x610] sm:$0xff] %v653
        %910 = vst [vmem:[%s190 + $0x618] sm:$0xff] %v654
        %911 = vst [vmem:[%s190 + $0x620] sm:$0xff] %v655
        %912 = vst [vmem:[%s190 + $0x628] sm:$0xff] %v656
        %913 = vst [vmem:[%s190 + $0x630] sm:$0xff] %v657
        %914 = vst [vmem:[%s190 + $0x638] sm:$0xff] %v658
        %915 = vst [vmem:[%s190 + $0x640] sm:$0xff] %v659
        %916 = vst [vmem:[%s190 + $0x648] sm:$0xff] %v660
        %917 = vst [vmem:[%s190 + $0x650] sm:$0xff] %v661
        %918 = vst [vmem:[%s190 + $0x658] sm:$0xff] %v662
        %919 = vst [vmem:[%s190 + $0x660] sm:$0xff] %v663
        %920 = vst [vmem:[%s190 + $0x668] sm:$0xff] %v664
        %921 = vst [vmem:[%s190 + $0x670] sm:$0xff] %v665
        %922 = vst [vmem:[%s190 + $0x678] sm:$0xff] %v666
        %923 = vst [vmem:[%s190 + $0x680] sm:$0xff] %v667
        %924 = vst [vmem:[%s190 + $0x688] sm:$0xff] %v668
        %925 = vst [vmem:[%s190 + $0x690] sm:$0xff] %v669
        %926 = vst [vmem:[%s190 + $0x698] sm:$0xff] %v670
        %927 = vst [vmem:[%s190 + $0x6a0] sm:$0xff] %v671
        %928 = vst [vmem:[%s190 + $0x6a8] sm:$0xff] %v672
        %929 = vst [vmem:[%s190 + $0x6b0] sm:$0xff] %v673
        %930 = vst [vmem:[%s190 + $0x6b8] sm:$0xff] %v674
        %931 = vst [vmem:[%s190 + $0x6c0] sm:$0xff] %v675
        %932 = vst [vmem:[%s190 + $0x6c8] sm:$0xff] %v676
        %933 = vst [vmem:[%s190 + $0x6d0] sm:$0xff] %v677
        %934 = vst [vmem:[%s190 + $0x6d8] sm:$0xff] %v678
        %935 = vst [vmem:[%s190 + $0x6e0] sm:$0xff] %v679
        %936 = vst [vmem:[%s190 + $0x6e8] sm:$0xff] %v680
        %937 = vst [vmem:[%s190 + $0x6f0] sm:$0xff] %v681
        %938 = vst [vmem:[%s190 + $0x6f8] sm:$0xff] %v682
        %939 = vst [vmem:[%s190 + $0x700] sm:$0xff] %v683
        %940 = vst [vmem:[%s190 + $0x708] sm:$0xff] %v684
        %941 = vst [vmem:[%s190 + $0x710] sm:$0xff] %v685
        %942 = vst [vmem:[%s190 + $0x718] sm:$0xff] %v686
        %943 = vst [vmem:[%s190 + $0x720] sm:$0xff] %v687
        %944 = vst [vmem:[%s190 + $0x728] sm:$0xff] %v688
        %945 = vst [vmem:[%s190 + $0x730] sm:$0xff] %v689
        %946 = vst [vmem:[%s190 + $0x738] sm:$0xff] %v690
        %947 = vst [vmem:[%s190 + $0x740] sm:$0xff] %v691
        %948 = vst [vmem:[%s190 + $0x748] sm:$0xff] %v692
        %949 = vst [vmem:[%s190 + $0x750] sm:$0xff] %v693
        %950 = vst [vmem:[%s190 + $0x758] sm:$0xff] %v694
        %951 = vst [vmem:[%s190 + $0x760] sm:$0xff] %v695
        %952 = vst [vmem:[%s190 + $0x768] sm:$0xff] %v696
        %953 = vst [vmem:[%s190 + $0x770] sm:$0xff] %v697
        %954 = vst [vmem:[%s190 + $0x778] sm:$0xff] %v698
        %955 = vst [vmem:[%s190 + $0x780] sm:$0xff] %v699
        %956 = vst [vmem:[%s190 + $0x788] sm:$0xff] %v700
        %957 = vst [vmem:[%s190 + $0x790] sm:$0xff] %v701
        %958 = vst [vmem:[%s190 + $0x798] sm:$0xff] %v702
        %959 = vst [vmem:[%s190 + $0x7a0] sm:$0xff] %v703
        %960 = vst [vmem:[%s190 + $0x7a8] sm:$0xff] %v704
        %961 = vst [vmem:[%s190 + $0x7b0] sm:$0xff] %v705
        %962 = vst [vmem:[%s190 + $0x7b8] sm:$0xff] %v706
        %963 = vst [vmem:[%s190 + $0x7c0] sm:$0xff] %v707
        %964 = vst [vmem:[%s190 + $0x7c8] sm:$0xff] %v708
        %965 = vst [vmem:[%s190 + $0x7d0] sm:$0xff] %v709
        %966 = vst [vmem:[%s190 + $0x7d8] sm:$0xff] %v710
        %967 = vst [vmem:[%s190 + $0x7e0] sm:$0xff] %v711
        %968 = vst [vmem:[%s190 + $0x7e8] sm:$0xff] %v712
        %969 = vst [vmem:[%s190 + $0x7f0] sm:$0xff] %v713
        %970 = vst [vmem:[%s190 + $0x7f8] sm:$0xff] %v714
        %s971 = sand.u32 %s95, 1
        %s972 = scalar_lea.sflag [#allocation4], %s971
        %s973 = sand.u32 %s95, 1
        %s974 = smul.addr %s973, 2048
        %s975 = scalar_lea.vmem [#allocation5], %s974
        // Predicated region
        $region33: #{tpu_custom_call.1} parent=27 // pred_check
          %p976 = pneg %p105
        $region34: #{tpu_custom_call.1} parent=27 // pred_check_branch
          %978 = sbr.rel (%p976) target = $region36
        $region35: #{tpu_custom_call.1} parent=27 // pred_region
          %s979 = smul.u32 256, %s24
          %s981 = ssub.s32 32768, 32768
          %982 = vsyncadd %s972, %s981
          %s983 = smul.addr %s23, 256
          %s984 = sadd.s32 %s979, %s983
          %s985 = smul.addr %s984, 128
          %s986 = scalar_lea.hbm %s2, %s985
          %s988 = sshll.u32 %s975, 4
          %s989 = int_to_ptr.vmem [resolvable:$true] %s988
          %991 = dma.vmem_to_hbm [thread:$0]  %s989, 32768, %s986, %s972
        $region36: #{tpu_custom_call.1} parent=27 // pred_fallthru
          _
      $region28: #{tpu_custom_call.1} parent=5 // pred_fallthru
        _
      %p992 = scmp.le.s32.totalorder 2, %s14
      // Predicated region
      $region37: #{tpu_custom_call.1} parent=5 // pred_check
        %p993 = pneg %p992
      $region38: #{tpu_custom_call.1} parent=5 // pred_check_branch
        %995 = sbr.rel (%p993) target = $region40
      $region39: #{tpu_custom_call.1} parent=5 // pred_region
        %s996 = ssub.s32 %s14, 2
        // Predicated region
        $region41: #{tpu_custom_call.1} parent=39 // pred_check
          %p997 = pneg %p111
        $region42: #{tpu_custom_call.1} parent=39 // pred_check_branch
          %999 = sbr.rel (%p997) target = $region44
        $region43: #{tpu_custom_call.1} parent=39 // pred_region
          %s1000 = sand.u32 %s96, 1
          %s1001 = scalar_lea.sflag [#allocation4], %s1000
          %s1002 = sand.u32 %s96, 1
          %s1003 = smul.addr %s1002, 2048
          %s1004 = scalar_lea.vmem [#allocation5], %s1003
          %1005 = dma.done %s1001, 32768
        $region44: #{tpu_custom_call.1} parent=39 // pred_fallthru
          _
      $region40: #{tpu_custom_call.1} parent=5 // pred_fallthru
        _
    $region6: #{tpu_custom_call.1} parent=1 // loop_footer
      %s18 = sadd.s32 1, %s14
    $region7: #{tpu_custom_call.1} parent=1 // loop_footer_branch
      %13 = sbr.rel target = $region3
    $region8: #{tpu_custom_call.1} parent=1 // loop_exit
      _
    %1006 = vsyncpa [#allocation3], 1
    %s1007 = scalar_lea.sflag [#allocation3], 1
    %1008 = vsyncpa %s1007, 1
    %1009 = vsyncpa [#allocation4], 1
    %s1010 = scalar_lea.sflag [#allocation4], 1
    %1011 = vsyncpa %s1010, 1

</llo_original>
